<compile_context>
chip_gen: v7x
topology: tpu7x:2x2x1
jax: 0.10.0
libtpu: 0.0.40
codegen_flags: <defaults>
</compile_context>

<pallas_src>
import functools
import math

import jax
import jax.numpy as jnp
from jax.experimental import pallas as pl
from jax.experimental.pallas import tpu as pltpu

EPS_BN = 1e-5


# ---------------------------------------------------------------------------
# Fused InvertedResidual Pallas kernel (time-on-lanes layout)
# ---------------------------------------------------------------------------
def _make_fused_ir_kernel(*, S, K, pad, pad_h, has_expand, use_res, mx_dtype):
    """Build the fused kernel with all block configuration baked in statically.

    Per grid step the kernel processes `block_b` windows x one time tile:
      x phase blocks : S x (block_b, Cin, Tt)      -- stride-S phase split
      halo blocks    : S x (block_b, 1, Cin, 2*pad_h)
      weights        : folded-BN 1x1 / depthwise weights (constant index maps)
      output         : (block_b, Cout, Tt)
    """

    def kernel(*refs):
        it = iter(refs)
        x_refs, hal_refs = [], []
        for _ in range(S):
            x_refs.append(next(it))
            hal_refs.append(next(it))
        if has_expand:
            we_ref = next(it)
            be_ref = next(it)
        wd_ref = next(it)
        bd_ref = next(it)
        wp_ref = next(it)
        bp_ref = next(it)
        o_ref = next(it)

        j = pl.program_id(1)
        n_t = pl.num_programs(1)
        block_b, _, Tt = x_refs[0].shape
        W = Tt + 2 * pad_h

        wd = wd_ref[...]                                      # (Hd, K) float32

        # Halo columns of the hidden activation that fall in the depthwise
        # zero-padding region: only at the global left/right time edges.
        col = jax.lax.broadcasted_iota(jnp.int32, (1, W), 1)
        edge_pad = jnp.logical_or(
            jnp.logical_and(j == 0, col < pad_h),
            jnp.logical_and(j == n_t - 1, col >= pad_h + Tt))

        for i in range(block_b):                              # static unroll
            # ---- assemble halo-extended input phases (in registers) ---------
            h_ph = []
            x_center0 = None
            for p in range(S):
                xc = x_refs[p][i]                             # (Cin, Tt)
                hal = hal_refs[p][i, 0]                       # (Cin, 2*pad_h)
                if p == 0:
                    x_center0 = xc
                xw = jnp.concatenate(
                    [hal[:, :pad_h], xc, hal[:, pad_h:]], axis=-1)   # (Cin, W)

                # ---- expand: 1x1 conv + folded BN + ReLU (MXU) ---------------
                if has_expand:
                    hw = jnp.dot(we_ref[...], xw.astype(mx_dtype),
                                 preferred_element_type=jnp.float32)
                    hw = jnp.maximum(hw + be_ref[...], 0.0)
                    # depthwise zero-padding lives on the *hidden* activation
                    hw = jnp.where(edge_pad, 0.0, hw)
                else:
                    hw = xw.astype(jnp.float32)
                h_ph.append(hw)                               # (Hd, W) float32

            # ---- depthwise [1,K] conv + folded BN + ReLU (VPU) ---------------
            # The stride is folded into the phase decomposition: tap k reads
            # phase (k-pad) % S shifted by (k-pad) // S lanes -- pure register
            # slices, no VMEM scratch round trip and no strided loads.
            acc = None
            for k in range(K):
                d = k - pad
                q = d // S
                tap = h_ph[d % S][:, pad_h + q: pad_h + q + Tt]
                term = tap * wd[:, k:k + 1]
                acc = term if acc is None else acc + term
            dw = jnp.maximum(acc + bd_ref[...], 0.0)          # (Hd, Tt)

            # ---- project: 1x1 conv + folded BN (MXU), optional residual ------
            y = jnp.dot(wp_ref[...], dw.astype(mx_dtype),
                        preferred_element_type=jnp.float32) + bp_ref[...]
            if use_res:
                y = y + x_center0.astype(jnp.float32)
            o_ref[i] = y.astype(o_ref.dtype)

    return kernel


# ---------------------------------------------------------------------------
# Tiling heuristics
# ---------------------------------------------------------------------------
def _choose_block_t(t_out, block_t):
    if block_t is not None:
        ok = (block_t == t_out) or (t_out % block_t == 0 and block_t % 128 == 0)
        if not ok:
            raise ValueError(
                "block_t must equal T_out, or divide it and be a multiple of 128")
        return block_t
    if t_out % 128 != 0:
        return t_out
    for cand in (512, 1024, 256, 2048, 128):
        if t_out % cand == 0 and t_out // cand >= 2:
            return cand
    return t_out


def _choose_block_b(B, n_t, block_b):
    if block_b is not None:
        assert B % block_b == 0, "block_b must divide the number of windows"
        return block_b
    # amortize per-step overhead but keep >= 4 grid steps when possible
    target_steps = min(4, B * n_t)
    best = 1
    for cand in range(1, min(B, 8) + 1):
        if B % cand == 0 and (B // cand) * n_t >= target_steps:
            best = cand
    return best


# ---------------------------------------------------------------------------
# Forward wrapper
# ---------------------------------------------------------------------------
def inverted_residual_forward(x_nchw, params, *, cfg, block_t=None, block_b=None):
    """Forward pass of InvertedResidual.

    x_nchw : (B, C_in, 1, T)  -- same layout as the PyTorch module.
    params : dict of folded-BN weights (arrays only; safe to pass through jit).
    cfg    : static Python dict (K, stride, has_expand, use_res, ...).
    Returns (B, C_out, 1, T_out); output dtype follows the input dtype.
    """
    B, Cin, H, T = x_nchw.shape
    assert H == 1, "InvertedResidual in this model only uses [1, K] kernels (H == 1)"
    K, S = cfg["K"], cfg["stride"]
    has_expand, use_res = cfg["has_expand"], cfg["use_res"]
    pad = (K - 1) // 2
    assert K % 2 == 1 and pad >= 1
    assert S >= 1 and T % S == 0, "time length must be divisible by the stride"
    T_out = (T + 2 * pad - K) // S + 1                     # == T // S here
    pad_h = -(-pad // S)                                   # halo width per phase/side
    Hd = params["wd"].shape[0]
    Cout = params["wp"].shape[0]
    mx_dtype = params["wp"].dtype

    # (B, Cin, T): time already on lanes -- no transpose, just drop the H axis.
    x = x_nchw[:, :, 0, :]

    Tt = _choose_block_t(T_out, block_t)
    n_t = T_out // Tt
    block_b = _choose_block_b(B, n_t, block_b)
    assert Tt >= pad_h

    # Stride-S phase decomposition + tiny per-tile halo side tensors.
    xs, halos = [], []
    for p in range(S):
        xp = x if S == 1 else x[:, :, p::S]                # (B, Cin, T_out)
        xs.append(xp)
        xr = xp.reshape(B, Cin, n_t, Tt)
        z = jnp.zeros((B, Cin, 1, pad_h), xp.dtype)
        left = jnp.concatenate([z, xr[:, :, :-1, Tt - pad_h:]], axis=2)
        right = jnp.concatenate([xr[:, :, 1:, :pad_h], z], axis=2)
        hal = jnp.concatenate([left, right], axis=-1)      # (B, Cin, n_t, 2*pad_h)
        halos.append(jnp.transpose(hal, (0, 2, 1, 3)))     # (B, n_t, Cin, 2*pad_h)

    kernel = _make_fused_ir_kernel(S=S, K=K, pad=pad, pad_h=pad_h,
                                   has_expand=has_expand, use_res=use_res,
                                   mx_dtype=mx_dtype)

    in_specs, args = [], []
    for p in range(S):
        in_specs.append(pl.BlockSpec((block_b, Cin, Tt), lambda b, j: (b, 0, j)))
        args.append(xs[p])
        in_specs.append(pl.BlockSpec((block_b, 1, Cin, 2 * pad_h),
                                     lambda b, j: (b, j, 0, 0)))
        args.append(halos[p])
    # NOTE: weight specs keep the default double buffering; pl.Buffered(1) would
    # shave a few KiB of VMEM but the weights here are tiny.
    if has_expand:
        in_specs += [pl.BlockSpec((Hd, Cin), lambda b, j: (0, 0)),
                     pl.BlockSpec((Hd, 1), lambda b, j: (0, 0))]
        args += [params["we"], params["be"]]
    in_specs += [pl.BlockSpec((Hd, K), lambda b, j: (0, 0)),
                 pl.BlockSpec((Hd, 1), lambda b, j: (0, 0)),
                 pl.BlockSpec((Cout, Hd), lambda b, j: (0, 0)),
                 pl.BlockSpec((Cout, 1), lambda b, j: (0, 0))]
    args += [params["wd"], params["bd"], params["wp"], params["bp"]]

    itemsize = jnp.dtype(x.dtype).itemsize
    w_bytes = 4 * (Hd * (Cin + K + 2) + Cout * (Hd + 1))
    blk_in = block_b * S * Cin * (Tt + 2 * pad_h) * itemsize
    blk_out = block_b * Cout * Tt * itemsize
    work = 2 * (S + 3) * Hd * (Tt + 2 * pad_h) * 4
    vmem_limit = int(min(max(2 * (2 * (blk_in + blk_out + w_bytes) + work),
                             32 * 1024 * 1024), 64 * 1024 * 1024))

    flops = 2 * B * T_out * ((S * Cin * Hd if has_expand else 0)
                             + K * Hd + Hd * Cout)
    bytes_accessed = int(B * Cin * T * itemsize + B * Cout * T_out * itemsize
                         + (B // block_b) * n_t * w_bytes)

    out = pl.pallas_call(
        kernel,
        out_shape=jax.ShapeDtypeStruct((B, Cout, T_out), x.dtype),
        grid=(B // block_b, n_t),
        in_specs=in_specs,
        out_specs=pl.BlockSpec((block_b, Cout, Tt), lambda b, j: (b, 0, j)),
        compiler_params=pltpu.CompilerParams(
            dimension_semantics=("parallel", "parallel"),
            vmem_limit_bytes=vmem_limit),
        cost_estimate=pl.CostEstimate(flops=int(flops), transcendentals=0,
                                      bytes_accessed=bytes_accessed),
    )(*args)

    return out[:, :, None, :]                              # (B, Cout, 1, T_out)


# ---------------------------------------------------------------------------
# Parameter construction (eval-mode BatchNorm folded into the conv weights)
# ---------------------------------------------------------------------------
def init_inverted_residual(key, n_in, n_out, stride, expand_ratio, K=5,
                           mxu_dtype=jnp.bfloat16):
    hidden = int(round(n_in * expand_ratio))
    has_expand = expand_ratio != 1
    use_res = (stride == 1) and (n_in == n_out)
    keys = iter(jax.random.split(key, 16))

    def bn(c):
        g = jax.random.uniform(next(keys), (c,), minval=0.7, maxval=1.3)
        b = jax.random.normal(next(keys), (c,)) * 0.05
        m = jax.random.normal(next(keys), (c,)) * 0.05
        v = jax.random.uniform(next(keys), (c,), minval=0.7, maxval=1.3)
        return g, b, m, v

    raw = {}
    if has_expand:
        raw["we"] = jax.random.normal(next(keys), (hidden, n_in)) / math.sqrt(n_in)
        raw["e_g"], raw["e_b"], raw["e_m"], raw["e_v"] = bn(hidden)
    raw["wd"] = jax.random.normal(next(keys), (hidden, K)) / math.sqrt(K)
    raw["d_g"], raw["d_b"], raw["d_m"], raw["d_v"] = bn(hidden)
    raw["wp"] = jax.random.normal(next(keys), (n_out, hidden)) / math.sqrt(hidden)
    raw["p_g"], raw["p_b"], raw["p_m"], raw["p_v"] = bn(n_out)

    def fold(g, b, m, v):
        s = g / jnp.sqrt(v + EPS_BN)
        return s, b - m * s

    params = {}
    if has_expand:
        s, sh = fold(raw["e_g"], raw["e_b"], raw["e_m"], raw["e_v"])
        params["we"] = (raw["we"] * s[:, None]).astype(mxu_dtype)      # (hidden, n_in)
        params["be"] = sh.reshape(hidden, 1).astype(jnp.float32)
    s, sh = fold(raw["d_g"], raw["d_b"], raw["d_m"], raw["d_v"])
    params["wd"] = (raw["wd"] * s[:, None]).astype(jnp.float32)        # (hidden, K)
    params["bd"] = sh.reshape(hidden, 1).astype(jnp.float32)
    s, sh = fold(raw["p_g"], raw["p_b"], raw["p_m"], raw["p_v"])
    params["wp"] = (raw["wp"] * s[:, None]).astype(mxu_dtype)          # (n_out, hidden)
    params["bp"] = sh.reshape(n_out, 1).astype(jnp.float32)

    cfg = dict(K=K, stride=stride, has_expand=has_expand, use_res=use_res,
               n_in=n_in, n_out=n_out, hidden=hidden)
    return params, raw, cfg


# ---------------------------------------------------------------------------
# Pure-JAX reference (PyTorch eval-mode semantics, un-folded BN)
# ---------------------------------------------------------------------------
def _bn_eval(x_bct, g, b, m, v):
    s = g / jnp.sqrt(v + EPS_BN)
    return (x_bct - m[None, :, None]) * s[None, :, None] + b[None, :, None]


def inverted_residual_reference(x, raw, cfg):
    """x: (B, C_in, T) -- channels second, time last."""
    K, S = cfg["K"], cfg["stride"]
    pad = (K - 1) // 2
    B, _, T = x.shape
    h = x
    if cfg["has_expand"]:
        h = jnp.einsum("hc,bct->bht", raw["we"], x)
        h = jnp.maximum(_bn_eval(h, raw["e_g"], raw["e_b"], raw["e_m"], raw["e_v"]), 0.0)
    hp = jnp.pad(h, ((0, 0), (0, 0), (pad, pad)))
    T_out = (T + 2 * pad - K) // S + 1
    acc = jnp.zeros((B, h.shape[1], T_out), jnp.float32)
    for k in range(K):
        acc = acc + (hp[:, :, k:k + S * (T_out - 1) + 1:S]
                     * raw["wd"][None, :, k, None])
    dw = jnp.maximum(_bn_eval(acc, raw["d_g"], raw["d_b"], raw["d_m"], raw["d_v"]), 0.0)
    y = jnp.einsum("oh,bht->bot", raw["wp"], dw)
    y = _bn_eval(y, raw["p_g"], raw["p_b"], raw["p_m"], raw["p_v"])
    if cfg["use_res"]:
        y = y + x
    return y


# ---------------------------------------------------------------------------
# Demo / self-check
# ---------------------------------------------------------------------------
if __name__ == "__main__":
    key = jax.random.PRNGKey(0)

    # (B, T, n_in, n_out, stride, expand_ratio, block_t, block_b, mxu dtype)
    tests = [
        (4, 16, 8, 8, 1, 2, None, None, jnp.float32),    # residual path, single tile
        (2, 16, 8, 16, 2, 2, None, None, jnp.float32),   # stride-2 downsampling block
        (4, 16, 8, 8, 1, 1, None, 2, jnp.bfloat16),      # no expand + residual, 2 windows/step
        (2, 256, 8, 8, 1, 2, 128, None, jnp.bfloat16),   # stride-1, 2 time tiles (halo exchange)
        (2, 512, 8, 16, 2, 3, 128, None, jnp.bfloat16),  # stride-2, 2 time tiles
    ]

    for i, (B, T, n_in, n_out, stride, er, bt, bb, mxd) in enumerate(tests):
        key, kp, kx = jax.random.split(key, 3)
        params, raw, cfg = init_inverted_residual(kp, n_in, n_out, stride, er,
                                                  mxu_dtype=mxd)
        x_nchw = jax.random.normal(kx, (B, n_in, 1, T), dtype=jnp.float32)

        # static config captured via partial -> never traced by jit
        fwd = jax.jit(functools.partial(inverted_residual_forward,
                                        cfg=cfg, block_t=bt, block_b=bb))
        out = fwd(x_nchw, params)
        jax.block_until_ready(out)

        ref = inverted_residual_reference(x_nchw[:, :, 0, :], raw, cfg)
        ref_nchw = ref[:, :, None, :]

        assert out.shape == ref_nchw.shape, (i, out.shape, ref_nchw.shape)
        out_f = out.astype(jnp.float32)
        assert bool(jnp.all(jnp.isfinite(out_f))), f"test {i}: non-finite output"
        err = float(jnp.max(jnp.abs(out_f - ref_nchw)))
        scale = float(jnp.max(jnp.abs(ref_nchw))) + 1e-6
        assert err <= 2.5e-2 * scale + 1e-3, f"test {i}: max abs err {err} (scale {scale})"

    print("KERNEL_OK")
</pallas_src>

<mosaic_0001>
module attributes {stable_mosaic.version = 11 : i64} {
  func.func @kernel(%arg0: i32, %arg1: i32, %arg2: memref<1x8x16xf32, #tpu.memory_space<vmem>>, %arg3: memref<1x1x8x4xf32, #tpu.memory_space<vmem>>, %arg4: memref<16x8xf32, #tpu.memory_space<vmem>>, %arg5: memref<16x1xf32, #tpu.memory_space<vmem>>, %arg6: memref<16x5xf32, #tpu.memory_space<vmem>>, %arg7: memref<16x1xf32, #tpu.memory_space<vmem>>, %arg8: memref<8x16xf32, #tpu.memory_space<vmem>>, %arg9: memref<8x1xf32, #tpu.memory_space<vmem>>, %arg10: memref<1x8x16xf32, #tpu.memory_space<vmem>>) attributes {dimension_semantics = [#tpu.dimension_semantics<parallel>, #tpu.dimension_semantics<parallel>], iteration_bounds = array<i64: 4, 1>, scalar_prefetch = 0 : i64, scratch_operands = 0 : i64, tpu.core_type = #tpu.core_type<tc>, window_params = [{transform_indices = @transform_0, window_bounds = array<i64: 1, 8, 16>}, {transform_indices = @transform_1, window_bounds = array<i64: 1, 1, 8, 4>}, {pipeline_mode = #tpu.pipeline_mode<synchronous>, transform_indices = @transform_2, window_bounds = array<i64: 16, 8>}, {pipeline_mode = #tpu.pipeline_mode<synchronous>, transform_indices = @transform_3, window_bounds = array<i64: 16, 1>}, {pipeline_mode = #tpu.pipeline_mode<synchronous>, transform_indices = @transform_4, window_bounds = array<i64: 16, 5>}, {pipeline_mode = #tpu.pipeline_mode<synchronous>, transform_indices = @transform_5, window_bounds = array<i64: 16, 1>}, {pipeline_mode = #tpu.pipeline_mode<synchronous>, transform_indices = @transform_6, window_bounds = array<i64: 8, 16>}, {pipeline_mode = #tpu.pipeline_mode<synchronous>, transform_indices = @transform_7, window_bounds = array<i64: 8, 1>}, {transform_indices = @transform_8, window_bounds = array<i64: 1, 8, 16>}]} {
    %c0 = arith.constant 0 : index
    %c0_0 = arith.constant 0 : index
    %0 = vector.load %arg6[%c0, %c0_0] : memref<16x5xf32, #tpu.memory_space<vmem>>, vector<16x5xf32>
    %1 = tpu.iota {dimensions = array<i32: 1>} : vector<1x20xi32>
    %c0_i32 = arith.constant 0 : i32
    %2 = arith.cmpi eq, %arg1, %c0_i32 : i32
    %c2_i32 = arith.constant 2 : i32
    %3 = vector.broadcast %c2_i32 : i32 to vector<1x20xi32>
    %4 = arith.cmpi slt, %1, %3 : vector<1x20xi32>
    %5 = vector.broadcast %2 : i1 to vector<1x20xi1>
    %6 = arith.andi %5, %4 : vector<1x20xi1>
    %c0_i32_1 = arith.constant 0 : i32
    %7 = arith.cmpi eq, %arg1, %c0_i32_1 : i32
    %c18_i32 = arith.constant 18 : i32
    %8 = vector.broadcast %c18_i32 : i32 to vector<1x20xi32>
    %9 = arith.cmpi sge, %1, %8 : vector<1x20xi32>
    %10 = vector.broadcast %7 : i1 to vector<1x20xi1>
    %11 = arith.andi %10, %9 : vector<1x20xi1>
    %12 = arith.ori %6, %11 : vector<1x20xi1>
    %c0_2 = arith.constant 0 : index
    %c0_3 = arith.constant 0 : index
    %c0_4 = arith.constant 0 : index
    %13 = vector.load %arg2[%c0_2, %c0_3, %c0_4] : memref<1x8x16xf32, #tpu.memory_space<vmem>>, vector<1x8x16xf32>
    %14 = vector.shape_cast %13 : vector<1x8x16xf32> to vector<8x16xf32>
    %c0_5 = arith.constant 0 : index
    %c0_6 = arith.constant 0 : index
    %c0_7 = arith.constant 0 : index
    %c0_8 = arith.constant 0 : index
    %15 = vector.load %arg3[%c0_5, %c0_6, %c0_7, %c0_8] : memref<1x1x8x4xf32, #tpu.memory_space<vmem>>, vector<1x1x8x4xf32>
    %16 = vector.shape_cast %15 : vector<1x1x8x4xf32> to vector<8x4xf32>
    %17 = vector.extract_strided_slice %16 {offsets = [0, 0], sizes = [8, 2], strides = [1, 1]} : vector<8x4xf32> to vector<8x2xf32>
    %18 = vector.extract_strided_slice %16 {offsets = [0, 2], sizes = [8, 2], strides = [1, 1]} : vector<8x4xf32> to vector<8x2xf32>
    %19 = tpu.concatenate %17, %14, %18 in 1 : vector<8x2xf32>, vector<8x16xf32>, vector<8x2xf32> -> vector<8x20xf32>
    %c0_9 = arith.constant 0 : index
    %c0_10 = arith.constant 0 : index
    %20 = vector.load %arg4[%c0_9, %c0_10] : memref<16x8xf32, #tpu.memory_space<vmem>>, vector<16x8xf32>
    %cst = arith.constant dense<0.000000e+00> : vector<16x20xf32>
    %21 = tpu.matmul %20, %19, %cst {dimension_numbers = #tpu.dot_dimension_numbers<[1], [0], [0], [1], [0, 0, 1, 1], [], []>} : vector<16x8xf32>, vector<8x20xf32>, vector<16x20xf32> -> vector<16x20xf32>
    %c0_11 = arith.constant 0 : index
    %c0_12 = arith.constant 0 : index
    %22 = vector.load %arg5[%c0_11, %c0_12] : memref<16x1xf32, #tpu.memory_space<vmem>>, vector<16x1xf32>
    %23 = vector.broadcast %22 : vector<16x1xf32> to vector<16x20xf32>
    %24 = arith.addf %21, %23 : vector<16x20xf32>
    %cst_13 = arith.constant 0.000000e+00 : f32
    %25 = vector.broadcast %cst_13 : f32 to vector<16x20xf32>
    %26 = arith.maximumf %24, %25 : vector<16x20xf32>
    %cst_14 = arith.constant 0.000000e+00 : f32
    %27 = vector.shape_cast %12 : vector<1x20xi1> to vector<1x20xi1>
    %28 = vector.broadcast %27 : vector<1x20xi1> to vector<16x20xi1>
    %29 = vector.broadcast %cst_14 : f32 to vector<16x20xf32>
    %30 = arith.select %28, %29, %26 : vector<16x20xi1>, vector<16x20xf32>
    %31 = vector.extract_strided_slice %30 {offsets = [0, 0], sizes = [16, 16], strides = [1, 1]} : vector<16x20xf32> to vector<16x16xf32>
    %32 = vector.extract_strided_slice %0 {offsets = [0, 0], sizes = [16, 1], strides = [1, 1]} : vector<16x5xf32> to vector<16x1xf32>
    %33 = vector.broadcast %32 : vector<16x1xf32> to vector<16x16xf32>
    %34 = arith.mulf %31, %33 : vector<16x16xf32>
    %35 = vector.extract_strided_slice %30 {offsets = [0, 1], sizes = [16, 16], strides = [1, 1]} : vector<16x20xf32> to vector<16x16xf32>
    %36 = vector.extract_strided_slice %0 {offsets = [0, 1], sizes = [16, 1], strides = [1, 1]} : vector<16x5xf32> to vector<16x1xf32>
    %37 = vector.broadcast %36 : vector<16x1xf32> to vector<16x16xf32>
    %38 = arith.mulf %35, %37 : vector<16x16xf32>
    %39 = arith.addf %34, %38 : vector<16x16xf32>
    %40 = vector.extract_strided_slice %30 {offsets = [0, 2], sizes = [16, 16], strides = [1, 1]} : vector<16x20xf32> to vector<16x16xf32>
    %41 = vector.extract_strided_slice %0 {offsets = [0, 2], sizes = [16, 1], strides = [1, 1]} : vector<16x5xf32> to vector<16x1xf32>
    %42 = vector.broadcast %41 : vector<16x1xf32> to vector<16x16xf32>
    %43 = arith.mulf %40, %42 : vector<16x16xf32>
    %44 = arith.addf %39, %43 : vector<16x16xf32>
    %45 = vector.extract_strided_slice %30 {offsets = [0, 3], sizes = [16, 16], strides = [1, 1]} : vector<16x20xf32> to vector<16x16xf32>
    %46 = vector.extract_strided_slice %0 {offsets = [0, 3], sizes = [16, 1], strides = [1, 1]} : vector<16x5xf32> to vector<16x1xf32>
    %47 = vector.broadcast %46 : vector<16x1xf32> to vector<16x16xf32>
    %48 = arith.mulf %45, %47 : vector<16x16xf32>
    %49 = arith.addf %44, %48 : vector<16x16xf32>
    %50 = vector.extract_strided_slice %30 {offsets = [0, 4], sizes = [16, 16], strides = [1, 1]} : vector<16x20xf32> to vector<16x16xf32>
    %51 = vector.extract_strided_slice %0 {offsets = [0, 4], sizes = [16, 1], strides = [1, 1]} : vector<16x5xf32> to vector<16x1xf32>
    %52 = vector.broadcast %51 : vector<16x1xf32> to vector<16x16xf32>
    %53 = arith.mulf %50, %52 : vector<16x16xf32>
    %54 = arith.addf %49, %53 : vector<16x16xf32>
    %c0_15 = arith.constant 0 : index
    %c0_16 = arith.constant 0 : index
    %55 = vector.load %arg7[%c0_15, %c0_16] : memref<16x1xf32, #tpu.memory_space<vmem>>, vector<16x1xf32>
    %56 = vector.broadcast %55 : vector<16x1xf32> to vector<16x16xf32>
    %57 = arith.addf %54, %56 : vector<16x16xf32>
    %cst_17 = arith.constant 0.000000e+00 : f32
    %58 = vector.broadcast %cst_17 : f32 to vector<16x16xf32>
    %59 = arith.maximumf %57, %58 : vector<16x16xf32>
    %c0_18 = arith.constant 0 : index
    %c0_19 = arith.constant 0 : index
    %60 = vector.load %arg8[%c0_18, %c0_19] : memref<8x16xf32, #tpu.memory_space<vmem>>, vector<8x16xf32>
    %cst_20 = arith.constant dense<0.000000e+00> : vector<8x16xf32>
    %61 = tpu.matmul %60, %59, %cst_20 {dimension_numbers = #tpu.dot_dimension_numbers<[1], [0], [0], [1], [0, 0, 1, 1], [], []>} : vector<8x16xf32>, vector<16x16xf32>, vector<8x16xf32> -> vector<8x16xf32>
    %c0_21 = arith.constant 0 : index
    %c0_22 = arith.constant 0 : index
    %62 = vector.load %arg9[%c0_21, %c0_22] : memref<8x1xf32, #tpu.memory_space<vmem>>, vector<8x1xf32>
    %63 = vector.broadcast %62 : vector<8x1xf32> to vector<8x16xf32>
    %64 = arith.addf %61, %63 : vector<8x16xf32>
    %65 = arith.addf %64, %14 : vector<8x16xf32>
    %c0_23 = arith.constant 0 : index
    %c0_24 = arith.constant 0 : index
    %c0_25 = arith.constant 0 : index
    %66 = vector.load %arg10[%c0_23, %c0_24, %c0_25] : memref<1x8x16xf32, #tpu.memory_space<vmem>>, vector<1x8x16xf32>
    %67 = vector.shape_cast %66 : vector<1x8x16xf32> to vector<8x16xf32>
    %68 = vector.shape_cast %65 : vector<8x16xf32> to vector<1x8x16xf32>
    tpu.vector_store %arg10[%c0_23, %c0_24, %c0_25], %68 {strides = array<i32>} : memref<1x8x16xf32, #tpu.memory_space<vmem>>, vector<1x8x16xf32>,
    return
  }
  func.func @transform_0(%arg0: i32, %arg1: i32) -> (i32, i32, i32) {
    %c0_i32 = arith.constant 0 : i32
    %c0_i32_0 = arith.constant 0 : i32
    return %arg0, %c0_i32, %arg1 : i32, i32, i32
  }
  func.func @transform_1(%arg0: i32, %arg1: i32) -> (i32, i32, i32, i32) {
    %c0_i32 = arith.constant 0 : i32
    %c0_i32_0 = arith.constant 0 : i32
    %c0_i32_1 = arith.constant 0 : i32
    return %arg0, %arg1, %c0_i32, %c0_i32_0 : i32, i32, i32, i32
  }
  func.func @transform_2(%arg0: i32, %arg1: i32) -> (i32, i32) {
    %c0_i32 = arith.constant 0 : i32
    %c0_i32_0 = arith.constant 0 : i32
    %c0_i32_1 = arith.constant 0 : i32
    return %c0_i32, %c0_i32_0 : i32, i32
  }
  func.func @transform_3(%arg0: i32, %arg1: i32) -> (i32, i32) {
    %c0_i32 = arith.constant 0 : i32
    %c0_i32_0 = arith.constant 0 : i32
    %c0_i32_1 = arith.constant 0 : i32
    return %c0_i32, %c0_i32_0 : i32, i32
  }
  func.func @transform_4(%arg0: i32, %arg1: i32) -> (i32, i32) {
    %c0_i32 = arith.constant 0 : i32
    %c0_i32_0 = arith.constant 0 : i32
    %c0_i32_1 = arith.constant 0 : i32
    return %c0_i32, %c0_i32_0 : i32, i32
  }
  func.func @transform_5(%arg0: i32, %arg1: i32) -> (i32, i32) {
    %c0_i32 = arith.constant 0 : i32
    %c0_i32_0 = arith.constant 0 : i32
    %c0_i32_1 = arith.constant 0 : i32
    return %c0_i32, %c0_i32_0 : i32, i32
  }
  func.func @transform_6(%arg0: i32, %arg1: i32) -> (i32, i32) {
    %c0_i32 = arith.constant 0 : i32
    %c0_i32_0 = arith.constant 0 : i32
    %c0_i32_1 = arith.constant 0 : i32
    return %c0_i32, %c0_i32_0 : i32, i32
  }
  func.func @transform_7(%arg0: i32, %arg1: i32) -> (i32, i32) {
    %c0_i32 = arith.constant 0 : i32
    %c0_i32_0 = arith.constant 0 : i32
    %c0_i32_1 = arith.constant 0 : i32
    return %c0_i32, %c0_i32_0 : i32, i32
  }
  func.func @transform_8(%arg0: i32, %arg1: i32) -> (i32, i32, i32) {
    %c0_i32 = arith.constant 0 : i32
    %c0_i32_0 = arith.constant 0 : i32
    return %arg0, %c0_i32, %arg1 : i32, i32, i32
  }
}

</mosaic_0001>

<llo_original>
// kernel: inverted_residual_forward.1
$region0: #{inverted_residual_forward.1}
  #allocation0 [shape = 'u32[]', space=smem, size = 0x4, offset = 0x4, fixed_abs, tag = 'smem constant byte address 0x4 - core index']
  #allocation1 [shape = 'u32[144,128]{1,0:T(1,128)}', space=vmem, size = 0x12000, scoped, tag = 'internal scratch']
  %s0 = inlined_call_operand.vmem [shape: f32[4,8,16], index: 0, kind: input, shape index: {}]
  %s1 = inlined_call_operand.vmem [shape: f32[4,1,8,4], index: 1, kind: input, shape index: {}]
  %s2 = inlined_call_operand.vmem [shape: f32[16,8], index: 2, kind: input, shape index: {}]
  %s3 = inlined_call_operand.vmem [shape: f32[16,1], index: 3, kind: input, shape index: {}]
  %s4 = inlined_call_operand.vmem [shape: f32[16,5], index: 4, kind: input, shape index: {}]
  %s5 = inlined_call_operand.vmem [shape: f32[16,1], index: 5, kind: input, shape index: {}]
  %s6 = inlined_call_operand.vmem [shape: f32[8,16], index: 6, kind: input, shape index: {}]
  %s7 = inlined_call_operand.vmem [shape: f32[8,1], index: 7, kind: input, shape index: {}]
  %s8 = inlined_call_operand.hbm [shape: f32[4,8,16], index: 8, kind: output, shape index: {}]
  %s9 = sld [smem:[#allocation0]]
  $region65: #{inverted_residual_forward.1} parent=0
    _
  %s11 = ssub.s32 1, %s9
  %s12 = scalar_select 0, %s11, %s9
  $region1: #{inverted_residual_forward.1} parent=0
    #allocation2 [shape = 'u8[8192]{0}', space=vmem, size = 0x2000, scoped, tag = 'output window, operand 0']
    #allocation3 [shape = 's32[2]{0}', space=sflag, size = 0x8, scoped, tag = 'scoped memory for inverted_residual_forward.1']
    %13 = vsyncpa [#allocation3], 0
    %s14 = scalar_lea.sflag [#allocation3], 1
    %15 = vsyncpa %s14, 0
    loop: start=0, step=1, limit=6
    $region2: #{inverted_residual_forward.1} parent=1 // loop_pre_header
      _
    $region3: #{inverted_residual_forward.1} parent=1 // loop_header
      %s17 = sphi 0, %s21
      %p18 = scmp.ge.s32.totalorder %s17, 6
      %s24 = sphi 0, %s36
      %s25 = sphi 0, %s32
      %s26 = sphi 0, %s24
      %s27 = sphi 0, %s25
      %s28 = sphi 0, %s26
      %s29 = sphi 0, %s27
      %s41 = sphi 0, %s43
      %s44 = sphi 0, %s41
      %s45 = sphi 0, %s44
      %s61 = sphi 0, %s45
      %s69 = sphi 0, %s71
      %s72 = sphi 0, %s69
      %s73 = sphi 0, %s72
      %s89 = sphi 0, %s73
      %s93 = sphi 0, %s93
      %s95 = sphi 0, %s93
      %s96 = sphi 0, %s95
      %s110 = sphi 0, %s96
      %s114 = sphi 0, %s114
      %s116 = sphi 0, %s114
      %s117 = sphi 0, %s116
      %s131 = sphi 0, %s117
      %s135 = sphi 0, %s135
      %s137 = sphi 0, %s135
      %s138 = sphi 0, %s137
      %s152 = sphi 0, %s138
      %s156 = sphi 0, %s156
      %s158 = sphi 0, %s156
      %s159 = sphi 0, %s158
      %s173 = sphi 0, %s159
      %s177 = sphi 0, %s177
      %s179 = sphi 0, %s177
      %s180 = sphi 0, %s179
      %s194 = sphi 0, %s180
      %s198 = sphi 0, %s198
      %s200 = sphi 0, %s198
      %s201 = sphi 0, %s200
      %s215 = sphi 0, %s201
      %s223 = sphi 0, %s225
      %s226 = sphi 0, %s223
      %s227 = sphi 0, %s226
      %s243 = sphi 0, %s227
    $region4: #{inverted_residual_forward.1} parent=1 // loop_header_branch
      %20 = sbr.rel (%p18) target = $region8
    $region5: #{inverted_residual_forward.1} parent=1 // loop_body
      %s22 = ssub.s32 %s17, 1
      %s23 = ssub.s32 %s17, 2
      %s30 = sadd.s32 1, %s25
      %p31 = scmp.ge.s32.totalorder %s30, 1
      %s32 = scalar_select %p31, 0, %s30
      %s33 = sadd.s32 1, %s24
      %s34 = scalar_select %p31, %s33, %s24
      %p35 = scmp.ge.s32.totalorder %s34, 4
      %s36 = scalar_select %p35, 0, %s34
      %s37 = ssub.s32 %s24, %s36
      %s38 = ssub.s32 %s25, %s32
      %s39 = sor.u32 %s37, %s38
      %p40 = scmp.eq.s32.totalorder %s39, 0
      %s42 = sadd.s32 %s41, 1
      %s43 = scalar_select %p40, %s41, %s42
      %p46 = pneg %p40
      %p47 = scmp.eq.s32.totalorder %s17, 3
      %p48 = por %p46, %p47
      %p49 = scmp.ne.s32.totalorder %s41, %s44
      %p50 = scmp.eq.s32.totalorder %s17, 0
      %p51 = por %p49, %p50
      %p52 = scmp.ne.s32.totalorder %s41, %s44
      %p53 = scmp.eq.s32.totalorder %s22, 3
      %p54 = por %p52, %p53
      %p55 = scmp.ne.s32.totalorder %s44, %s45
      %p56 = scmp.eq.s32.totalorder %s22, 0
      %p57 = por %p55, %p56
      %p58 = scmp.ne.s32.totalorder %s44, %s45
      %p59 = scmp.eq.s32.totalorder %s23, 3
      %p60 = por %p58, %p59
      %p62 = scmp.ne.s32.totalorder %s45, %s61
      %p63 = scmp.eq.s32.totalorder %s23, 0
      %p64 = por %p62, %p63
      %s65 = ssub.s32 %s24, %s36
      %s66 = ssub.s32 %s25, %s32
      %s67 = sor.u32 %s65, %s66
      %p68 = scmp.eq.s32.totalorder %s67, 0
      %s70 = sadd.s32 %s69, 1
      %s71 = scalar_select %p68, %s69, %s70
      %p74 = pneg %p68
      %p75 = scmp.eq.s32.totalorder %s17, 3
      %p76 = por %p74, %p75
      %p77 = scmp.ne.s32.totalorder %s69, %s72
      %p78 = scmp.eq.s32.totalorder %s17, 0
      %p79 = por %p77, %p78
      %p80 = scmp.ne.s32.totalorder %s69, %s72
      %p81 = scmp.eq.s32.totalorder %s22, 3
      %p82 = por %p80, %p81
      %p83 = scmp.ne.s32.totalorder %s72, %s73
      %p84 = scmp.eq.s32.totalorder %s22, 0
      %p85 = por %p83, %p84
      %p86 = scmp.ne.s32.totalorder %s72, %s73
      %p87 = scmp.eq.s32.totalorder %s23, 3
      %p88 = por %p86, %p87
      %p90 = scmp.ne.s32.totalorder %s73, %s89
      %p91 = scmp.eq.s32.totalorder %s23, 0
      %p92 = por %p90, %p91
      %s94 = sadd.s32 %s93, 1
      %p97 = scmp.eq.s32.totalorder %s17, 3
      %p98 = scmp.ne.s32.totalorder %s93, %s95
      %p99 = scmp.eq.s32.totalorder %s17, 0
      %p100 = por %p98, %p99
      %p101 = scmp.ne.s32.totalorder %s93, %s95
      %p102 = scmp.eq.s32.totalorder %s22, 3
      %p103 = por %p101, %p102
      %p104 = scmp.ne.s32.totalorder %s95, %s96
      %p105 = scmp.eq.s32.totalorder %s22, 0
      %p106 = por %p104, %p105
      %p107 = scmp.ne.s32.totalorder %s95, %s96
      %p108 = scmp.eq.s32.totalorder %s23, 3
      %p109 = por %p107, %p108
      %p111 = scmp.ne.s32.totalorder %s96, %s110
      %p112 = scmp.eq.s32.totalorder %s23, 0
      %p113 = por %p111, %p112
      %s115 = sadd.s32 %s114, 1
      %p118 = scmp.eq.s32.totalorder %s17, 3
      %p119 = scmp.ne.s32.totalorder %s114, %s116
      %p120 = scmp.eq.s32.totalorder %s17, 0
      %p121 = por %p119, %p120
      %p122 = scmp.ne.s32.totalorder %s114, %s116
      %p123 = scmp.eq.s32.totalorder %s22, 3
      %p124 = por %p122, %p123
      %p125 = scmp.ne.s32.totalorder %s116, %s117
      %p126 = scmp.eq.s32.totalorder %s22, 0
      %p127 = por %p125, %p126
      %p128 = scmp.ne.s32.totalorder %s116, %s117
      %p129 = scmp.eq.s32.totalorder %s23, 3
      %p130 = por %p128, %p129
      %p132 = scmp.ne.s32.totalorder %s117, %s131
      %p133 = scmp.eq.s32.totalorder %s23, 0
      %p134 = por %p132, %p133
      %s136 = sadd.s32 %s135, 1
      %p139 = scmp.eq.s32.totalorder %s17, 3
      %p140 = scmp.ne.s32.totalorder %s135, %s137
      %p141 = scmp.eq.s32.totalorder %s17, 0
      %p142 = por %p140, %p141
      %p143 = scmp.ne.s32.totalorder %s135, %s137
      %p144 = scmp.eq.s32.totalorder %s22, 3
      %p145 = por %p143, %p144
      %p146 = scmp.ne.s32.totalorder %s137, %s138
      %p147 = scmp.eq.s32.totalorder %s22, 0
      %p148 = por %p146, %p147
      %p149 = scmp.ne.s32.totalorder %s137, %s138
      %p150 = scmp.eq.s32.totalorder %s23, 3
      %p151 = por %p149, %p150
      %p153 = scmp.ne.s32.totalorder %s138, %s152
      %p154 = scmp.eq.s32.totalorder %s23, 0
      %p155 = por %p153, %p154
      %s157 = sadd.s32 %s156, 1
      %p160 = scmp.eq.s32.totalorder %s17, 3
      %p161 = scmp.ne.s32.totalorder %s156, %s158
      %p162 = scmp.eq.s32.totalorder %s17, 0
      %p163 = por %p161, %p162
      %p164 = scmp.ne.s32.totalorder %s156, %s158
      %p165 = scmp.eq.s32.totalorder %s22, 3
      %p166 = por %p164, %p165
      %p167 = scmp.ne.s32.totalorder %s158, %s159
      %p168 = scmp.eq.s32.totalorder %s22, 0
      %p169 = por %p167, %p168
      %p170 = scmp.ne.s32.totalorder %s158, %s159
      %p171 = scmp.eq.s32.totalorder %s23, 3
      %p172 = por %p170, %p171
      %p174 = scmp.ne.s32.totalorder %s159, %s173
      %p175 = scmp.eq.s32.totalorder %s23, 0
      %p176 = por %p174, %p175
      %s178 = sadd.s32 %s177, 1
      %p181 = scmp.eq.s32.totalorder %s17, 3
      %p182 = scmp.ne.s32.totalorder %s177, %s179
      %p183 = scmp.eq.s32.totalorder %s17, 0
      %p184 = por %p182, %p183
      %p185 = scmp.ne.s32.totalorder %s177, %s179
      %p186 = scmp.eq.s32.totalorder %s22, 3
      %p187 = por %p185, %p186
      %p188 = scmp.ne.s32.totalorder %s179, %s180
      %p189 = scmp.eq.s32.totalorder %s22, 0
      %p190 = por %p188, %p189
      %p191 = scmp.ne.s32.totalorder %s179, %s180
      %p192 = scmp.eq.s32.totalorder %s23, 3
      %p193 = por %p191, %p192
      %p195 = scmp.ne.s32.totalorder %s180, %s194
      %p196 = scmp.eq.s32.totalorder %s23, 0
      %p197 = por %p195, %p196
      %s199 = sadd.s32 %s198, 1
      %p202 = scmp.eq.s32.totalorder %s17, 3
      %p203 = scmp.ne.s32.totalorder %s198, %s200
      %p204 = scmp.eq.s32.totalorder %s17, 0
      %p205 = por %p203, %p204
      %p206 = scmp.ne.s32.totalorder %s198, %s200
      %p207 = scmp.eq.s32.totalorder %s22, 3
      %p208 = por %p206, %p207
      %p209 = scmp.ne.s32.totalorder %s200, %s201
      %p210 = scmp.eq.s32.totalorder %s22, 0
      %p211 = por %p209, %p210
      %p212 = scmp.ne.s32.totalorder %s200, %s201
      %p213 = scmp.eq.s32.totalorder %s23, 3
      %p214 = por %p212, %p213
      %p216 = scmp.ne.s32.totalorder %s201, %s215
      %p217 = scmp.eq.s32.totalorder %s23, 0
      %p218 = por %p216, %p217
      %s219 = ssub.s32 %s24, %s36
      %s220 = ssub.s32 %s25, %s32
      %s221 = sor.u32 %s219, %s220
      %p222 = scmp.eq.s32.totalorder %s221, 0
      %s224 = sadd.s32 %s223, 1
      %s225 = scalar_select %p222, %s223, %s224
      %p228 = pneg %p222
      %p229 = scmp.eq.s32.totalorder %s17, 3
      %p230 = por %p228, %p229
      %p231 = scmp.ne.s32.totalorder %s223, %s226
      %p232 = scmp.eq.s32.totalorder %s17, 0
      %p233 = por %p231, %p232
      %p234 = scmp.ne.s32.totalorder %s223, %s226
      %p235 = scmp.eq.s32.totalorder %s22, 3
      %p236 = por %p234, %p235
      %p237 = scmp.ne.s32.totalorder %s226, %s227
      %p238 = scmp.eq.s32.totalorder %s22, 0
      %p239 = por %p237, %p238
      %p240 = scmp.ne.s32.totalorder %s226, %s227
      %p241 = scmp.eq.s32.totalorder %s23, 3
      %p242 = por %p240, %p241
      %p244 = scmp.ne.s32.totalorder %s227, %s243
      %p245 = scmp.eq.s32.totalorder %s23, 0
      %p246 = por %p244, %p245
      %p247 = scmp.le.s32.totalorder 1, %s17
      %p248 = scmp.lt.s32.totalorder %s17, 5
      %p249 = pnand %p247, %p248
      %p250 = pneg %p249
      // Predicated region
      $region9: #{inverted_residual_forward.1} parent=5 // pred_check
        _
      $region10: #{inverted_residual_forward.1} parent=5 // pred_check_branch
        %252 = sbr.rel (%p249) target = $region12
      $region11: #{inverted_residual_forward.1} parent=5 // pred_region
        %s253 = ssub.s32 %s17, 1
        // Predicated region
        $region13: #{inverted_residual_forward.1} parent=11 // pred_check
          %p254 = pneg %p106
        $region14: #{inverted_residual_forward.1} parent=11 // pred_check_branch
          %256 = sbr.rel (%p254) target = $region16
        $region15: #{inverted_residual_forward.1} parent=11 // pred_region
          _
        $region16: #{inverted_residual_forward.1} parent=11 // pred_fallthru
          _
        // Predicated region
        $region17: #{inverted_residual_forward.1} parent=11 // pred_check
          %p257 = pneg %p127
        $region18: #{inverted_residual_forward.1} parent=11 // pred_check_branch
          %259 = sbr.rel (%p257) target = $region20
        $region19: #{inverted_residual_forward.1} parent=11 // pred_region
          _
        $region20: #{inverted_residual_forward.1} parent=11 // pred_fallthru
          _
        // Predicated region
        $region21: #{inverted_residual_forward.1} parent=11 // pred_check
          %p260 = pneg %p148
        $region22: #{inverted_residual_forward.1} parent=11 // pred_check_branch
          %262 = sbr.rel (%p260) target = $region24
        $region23: #{inverted_residual_forward.1} parent=11 // pred_region
          _
        $region24: #{inverted_residual_forward.1} parent=11 // pred_fallthru
          _
        // Predicated region
        $region25: #{inverted_residual_forward.1} parent=11 // pred_check
          %p263 = pneg %p169
        $region26: #{inverted_residual_forward.1} parent=11 // pred_check_branch
          %265 = sbr.rel (%p263) target = $region28
        $region27: #{inverted_residual_forward.1} parent=11 // pred_region
          _
        $region28: #{inverted_residual_forward.1} parent=11 // pred_fallthru
          _
        // Predicated region
        $region29: #{inverted_residual_forward.1} parent=11 // pred_check
          %p266 = pneg %p190
        $region30: #{inverted_residual_forward.1} parent=11 // pred_check_branch
          %268 = sbr.rel (%p266) target = $region32
        $region31: #{inverted_residual_forward.1} parent=11 // pred_region
          _
        $region32: #{inverted_residual_forward.1} parent=11 // pred_fallthru
          _
        // Predicated region
        $region33: #{inverted_residual_forward.1} parent=11 // pred_check
          %p269 = pneg %p211
        $region34: #{inverted_residual_forward.1} parent=11 // pred_check_branch
          %271 = sbr.rel (%p269) target = $region36
        $region35: #{inverted_residual_forward.1} parent=11 // pred_region
          _
        $region36: #{inverted_residual_forward.1} parent=11 // pred_fallthru
          _
      $region12: #{inverted_residual_forward.1} parent=5 // pred_fallthru
        _
      %p272 = scmp.lt.s32.totalorder %s17, 4
      // Predicated region
      $region37: #{inverted_residual_forward.1} parent=5 // pred_check
        %p273 = pneg %p272
      $region38: #{inverted_residual_forward.1} parent=5 // pred_check_branch
        %275 = sbr.rel (%p273) target = $region40
      $region39: #{inverted_residual_forward.1} parent=5 // pred_region
        // Predicated region
        $region41: #{inverted_residual_forward.1} parent=39 // pred_check
          %p276 = pneg %p51
        $region42: #{inverted_residual_forward.1} parent=39 // pred_check_branch
          %278 = sbr.rel (%p276) target = $region44
        $region43: #{inverted_residual_forward.1} parent=39 // pred_region
          %p279 = scmp.lt.s32.totalorder %s24, 3
          %s280 = scalar_select %p279, %s24, 3
          %p281 = scmp.lt.s32.totalorder %s25, 0
          %s282 = scalar_select %p281, %s25, 0
          %s283 = sadd.s32 %s282, %s280
          %s284 = smul.addr %s283, 8
          %s285 = scalar_lea.vmem %s0, %s284
        $region44: #{inverted_residual_forward.1} parent=39 // pred_fallthru
          _
        // Predicated region
        $region45: #{inverted_residual_forward.1} parent=39 // pred_check
          %p286 = pneg %p79
        $region46: #{inverted_residual_forward.1} parent=39 // pred_check_branch
          %288 = sbr.rel (%p286) target = $region48
        $region47: #{inverted_residual_forward.1} parent=39 // pred_region
          %p289 = scmp.lt.s32.totalorder %s24, 3
          %s290 = scalar_select %p289, %s24, 3
          %p291 = scmp.lt.s32.totalorder %s25, 0
          %s292 = scalar_select %p291, %s25, 0
          %s293 = sadd.s32 %s292, %s290
          %s294 = smul.addr %s293, 8
          %s295 = scalar_lea.vmem %s1, %s294
        $region48: #{inverted_residual_forward.1} parent=39 // pred_fallthru
          _
      $region40: #{inverted_residual_forward.1} parent=5 // pred_fallthru
        _
      %p296 = scmp.le.s32.totalorder 1, %s17
      %p297 = scmp.lt.s32.totalorder %s17, 5
      %p298 = pnand %p296, %p297
      %p299 = pneg %p298
      // Predicated region
      $region49: #{inverted_residual_forward.1} parent=5 // pred_check
        _
      $region50: #{inverted_residual_forward.1} parent=5 // pred_check_branch
        %301 = sbr.rel (%p298) target = $region52
      $region51: #{inverted_residual_forward.1} parent=5 // pred_region
        %s302 = ssub.s32 %s17, 1
        %p303 = scmp.lt.s32.totalorder %s26, 3
        %s304 = scalar_select %p303, %s26, 3
        %p305 = scmp.lt.s32.totalorder %s27, 0
        %s306 = scalar_select %p305, %s27, 0
        %s307 = sadd.s32 %s306, %s304
        %s308 = smul.addr %s307, 8
        %s309 = scalar_lea.vmem %s0, %s308
        %p310 = pneg %p57
        %p311 = pneg %p54
        %p312 = scmp.lt.s32.totalorder %s26, 3
        %s313 = scalar_select %p312, %s26, 3
        %p314 = scmp.lt.s32.totalorder %s27, 0
        %s315 = scalar_select %p314, %s27, 0
        %s316 = sadd.s32 %s315, %s313
        %s317 = smul.addr %s316, 8
        %s318 = scalar_lea.vmem %s1, %s317
        %p319 = pneg %p85
        %p320 = pneg %p82
        %p321 = pneg %p106
        %p322 = pneg %p103
        %p323 = pneg %p127
        %p324 = pneg %p124
        %p325 = pneg %p148
        %p326 = pneg %p145
        %p327 = pneg %p169
        %p328 = pneg %p166
        %p329 = pneg %p190
        %p330 = pneg %p187
        %p331 = pneg %p211
        %p332 = pneg %p208
        %p333 = pneg %p239
        %p334 = pneg %p236
        %s335 = sand.u32 %s226, 1
        %s336 = scalar_lea.sflag [#allocation3], %s335
        %s337 = sand.u32 %s226, 1
        %s338 = smul.addr %s337, 8
        %s339 = scalar_lea.vmem [#allocation2], %s338
        %p340 = scmp.lt.s32.totalorder %s26, 3
        %s341 = scalar_select %p340, %s26, 3
        %p342 = scmp.lt.s32.totalorder %s27, 0
        %s343 = scalar_select %p342, %s27, 0
        %s344 = sadd.s32 %s343, %s341
        %s345 = smul.addr %s344, 8
        %s346 = scalar_lea.vmem %s0, %s345
        %p347 = scmp.lt.s32.totalorder %s26, 3
        %s348 = scalar_select %p347, %s26, 3
        %p349 = scmp.lt.s32.totalorder %s27, 0
        %s350 = scalar_select %p349, %s27, 0
        %s351 = sadd.s32 %s350, %s348
        %s352 = smul.addr %s351, 8
        %s353 = scalar_lea.vmem %s1, %s352
        %v354 = vld [vmem:[%s4] sm:$0xff]
        %v355 = vld [vmem:[%s4 + $0x8] sm:$0xff]
        %v356 = vlaneseq
        %v357 = vand.u32 %v356, 127
        %p358 = scmp.eq.s32.totalorder %s27, 0
        %vm359 = vcmp.lt.s32.totalorder %v357, 2
        %s360 = scalar_select %p358, 1, 0
        %v361 = vstv %s360
        %vm362 = vcmp.eq.s32.totalorder %v361, 1
        %vm363 = vmand %vm362, %vm359
        %vm364 = vcmp.ge.s32.totalorder %v357, 18
        %vm365 = vmand %vm362, %vm364
        %vm366 = vmor %vm363, %vm365
        %v367 = vld [vmem:[%s346] sm:$0xff]
        %v368 = vld [vmem:[%s353] sm:$0xff]
        %370 = vrot.lane.b32.xlu0 %v367, 2
        %v371 = vpop.permute.xlu0 %370
        %374 = vrot.lane.b32.xlu0 %v368, 16
        %v375 = vpop.permute.xlu0 %374
        %vm377 = vcmask 15360
        %v378 = vsel %vm377, %v368, %v371
        %vm379 = vcmask 146432
        %v380 = vsel %vm379, %v378, %v375
        %v381 = vld [vmem:[%s2] sm:$0xff]
        %v382 = vld [vmem:[%s2 + $0x8] sm:$0xff]
        %v383 = vld [vmem:[%s3] sm:$0xff]
        %v384 = vld [vmem:[%s3 + $0x8] sm:$0xff]
        %386 = vset.pattern.permute.xlu0 0
        %387 = vperm.xlu0 %386, %v383
        %v388 = vpop.permute.xlu0 %387
        %391 = vset.pattern.permute.xlu0 0
        %392 = vperm.xlu0 %391, %v384
        %v393 = vpop.permute.xlu0 %392
        %vm395 = vcmask 64512
        %v397 = vsel %vm395, %v381, 0
        %v400 = vsel %vm395, %v382, 0
        %402 = vmatprep.subr.mxu0 0.0
        %403 = vmatpush1.msra.mxu0 %v380
        %404 = vmatprep.subr.mxu0 0.0
        %405 = vmatpush1.msra.mxu0 0.0
        %406 = vmatprep.subr.mxu0 0.0
        %407 = vmatpush1.msra.mxu0 0.0
        %408 = vmatprep.subr.mxu0 0.0
        %409 = vmatpush1.msra.mxu0 0.0
        %410 = vmatprep.subr.mxu0 0.0
        %411 = vmatpush1.msra.mxu0 0.0
        %412 = vmatprep.subr.mxu0 0.0
        %413 = vmatpush1.msra.mxu0 0.0
        %414 = vmatprep.subr.mxu0 0.0
        %415 = vmatpush1.msra.mxu0 0.0
        %416 = vmatprep.subr.mxu0 0.0
        %417 = vmatpush1.msra.mxu0 0.0
        %418 = vmatprep.subr.mxu0 0.0
        %419 = vmatpush1.msra.mxu0 0.0
        %420 = vmatprep.subr.mxu0 0.0
        %421 = vmatpush1.msra.mxu0 0.0
        %422 = vmatprep.subr.mxu0 0.0
        %423 = vmatpush1.msra.mxu0 0.0
        %424 = vmatprep.subr.mxu0 0.0
        %425 = vmatpush1.msra.mxu0 0.0
        %426 = vmatprep.subr.mxu0 0.0
        %427 = vmatpush1.msra.mxu0 0.0
        %428 = vmatprep.subr.mxu0 0.0
        %429 = vmatpush1.msra.mxu0 0.0
        %430 = vmatprep.subr.mxu0 0.0
        %431 = vmatpush1.msra.mxu0 0.0
        %432 = vmatprep.subr.mxu0 0.0
        %433 = vmatpush1.msra.mxu0 0.0
        %434 = vmatprep.subr.mxu0 0.0
        %435 = vmatpush1.msra.mxu0 0.0
        %436 = vmatprep.subr.mxu0 0.0
        %437 = vmatpush1.msra.mxu0 0.0
        %438 = vmatprep.subr.mxu0 0.0
        %439 = vmatpush1.msra.mxu0 0.0
        %440 = vmatprep.subr.mxu0 0.0
        %441 = vmatpush1.msra.mxu0 0.0
        %442 = vmatprep.subr.mxu0 0.0
        %443 = vmatpush1.msra.mxu0 0.0
        %444 = vmatprep.subr.mxu0 0.0
        %445 = vmatpush1.msra.mxu0 0.0
        %446 = vmatprep.subr.mxu0 0.0
        %447 = vmatpush1.msra.mxu0 0.0
        %448 = vmatprep.subr.mxu0 0.0
        %449 = vmatpush1.msra.mxu0 0.0
        %450 = vmatprep.subr.mxu0 0.0
        %451 = vmatpush1.msra.mxu0 0.0
        %452 = vmatprep.subr.mxu0 0.0
        %453 = vmatpush1.msra.mxu0 0.0
        %454 = vmatprep.subr.mxu0 0.0
        %455 = vmatpush1.msra.mxu0 0.0
        %456 = vmatprep.subr.mxu0 0.0
        %457 = vmatpush1.msra.mxu0 0.0
        %458 = vmatprep.subr.mxu0 0.0
        %459 = vmatpush1.msra.mxu0 0.0
        %460 = vmatprep.subr.mxu0 0.0
        %461 = vmatpush1.msra.mxu0 0.0
        %462 = vmatprep.subr.mxu0 0.0
        %463 = vmatpush1.msra.mxu0 0.0
        %464 = vmatprep.subr.mxu0 0.0
        %465 = vmatpush1.msra.mxu0 0.0
        %466 = vmatprep.mubr.f32.mxu0 0.0
        %467 = vmatmul.mubr.f32.gmra.mrb[0].mxu0 %v397
        %v468 = vpop.f32.mrb[0].mxu0
        %v469 = vadd.f32 %v388, %v468
        %v470 = vpop.f32.mrb[0].mxu0
        %471 = vmatprep.mubr.f32.mxu0 0.0
        %472 = vmatmul.mubr.f32.gmra.mrb[0].mxu0 %v400
        %v473 = vpop.f32.mrb[0].mxu0
        %v474 = vadd.f32 %v393, %v473
        %v475 = vpop.f32.mrb[0].mxu0
        %476 = vdwg.mxu0
        %v477 = vmax.f32 %v469, 0.0
        %v478 = vmax.f32 %v474, 0.0
        %v479 = vsel %vm366, 1, 0
        %vm480 = vcmp.eq.s32.totalorder %v479, 1
        %v481 = vsel %vm480, 0.0, %v477
        %v482 = vsel %vm480, 0.0, %v478
        %484 = vset.pattern.permute.xlu0 0
        %485 = vperm.xlu0 %484, %v354
        %v486 = vpop.permute.xlu0 %485
        %489 = vset.pattern.permute.xlu0 0
        %490 = vperm.xlu0 %489, %v355
        %v491 = vpop.permute.xlu0 %490
        %v493 = vmul.f32 %v481, %v486
        %v494 = vmul.f32 %v482, %v491
        %495 = vset.pattern.permute.xlu0 1
        %496 = vperm.xlu0 %495, %v354
        %v497 = vpop.permute.xlu0 %496
        %499 = vset.pattern.permute.xlu0 1
        %500 = vperm.xlu0 %499, %v355
        %v501 = vpop.permute.xlu0 %500
        %v503 = vmul.f32 %v481, %v497
        %v504 = vmul.f32 %v482, %v501
        %507 = vrot.lane.b32.xlu0 %v503, 127
        %v508 = vpop.permute.xlu0 %507
        %509 = vrot.lane.b32.xlu0 %v504, 127
        %v510 = vpop.permute.xlu0 %509
        %v513 = vadd.f32 %v493, %v508
        %v514 = vadd.f32 %v494, %v510
        %515 = vset.pattern.permute.xlu0 2
        %516 = vperm.xlu0 %515, %v354
        %v517 = vpop.permute.xlu0 %516
        %519 = vset.pattern.permute.xlu0 2
        %520 = vperm.xlu0 %519, %v355
        %v521 = vpop.permute.xlu0 %520
        %v523 = vmul.f32 %v481, %v517
        %v524 = vmul.f32 %v482, %v521
        %527 = vrot.lane.b32.xlu0 %v523, 126
        %v528 = vpop.permute.xlu0 %527
        %529 = vrot.lane.b32.xlu0 %v524, 126
        %v530 = vpop.permute.xlu0 %529
        %v533 = vadd.f32 %v513, %v528
        %v534 = vadd.f32 %v514, %v530
        %535 = vset.pattern.permute.xlu0 3
        %536 = vperm.xlu0 %535, %v354
        %v537 = vpop.permute.xlu0 %536
        %539 = vset.pattern.permute.xlu0 3
        %540 = vperm.xlu0 %539, %v355
        %v541 = vpop.permute.xlu0 %540
        %v543 = vmul.f32 %v481, %v537
        %v544 = vmul.f32 %v482, %v541
        %547 = vrot.lane.b32.xlu0 %v543, 125
        %v548 = vpop.permute.xlu0 %547
        %549 = vrot.lane.b32.xlu0 %v544, 125
        %v550 = vpop.permute.xlu0 %549
        %v553 = vadd.f32 %v533, %v548
        %v554 = vadd.f32 %v534, %v550
        %555 = vset.pattern.permute.xlu0 4
        %556 = vperm.xlu0 %555, %v354
        %v557 = vpop.permute.xlu0 %556
        %559 = vset.pattern.permute.xlu0 4
        %560 = vperm.xlu0 %559, %v355
        %v561 = vpop.permute.xlu0 %560
        %v563 = vmul.f32 %v481, %v557
        %v564 = vmul.f32 %v482, %v561
        %567 = vrot.lane.b32.xlu0 %v563, 124
        %v568 = vpop.permute.xlu0 %567
        %569 = vrot.lane.b32.xlu0 %v564, 124
        %v570 = vpop.permute.xlu0 %569
        %v573 = vadd.f32 %v553, %v568
        %v574 = vadd.f32 %v554, %v570
        %v575 = vld [vmem:[%s5] sm:$0xff]
        %v576 = vld [vmem:[%s5 + $0x8] sm:$0xff]
        %578 = vset.pattern.permute.xlu0 0
        %579 = vperm.xlu0 %578, %v575
        %v580 = vpop.permute.xlu0 %579
        %583 = vset.pattern.permute.xlu0 0
        %584 = vperm.xlu0 %583, %v576
        %v585 = vpop.permute.xlu0 %584
        %v587 = vadd.f32 %v573, %v580
        %v588 = vadd.f32 %v574, %v585
        %v589 = vmax.f32 %v587, 0.0
        %v590 = vmax.f32 %v588, 0.0
        %v591 = vld [vmem:[%s6] sm:$0xff]
        %v592 = vld [vmem:[%s7] sm:$0xff]
        %594 = vset.pattern.permute.xlu0 0
        %595 = vperm.xlu0 %594, %v592
        %v596 = vpop.permute.xlu0 %595
        %vm598 = vcmask 130048
        %v600 = vsel %vm598, %v591, 0
        %602 = vmatprep.subr.mxu0 0.0
        %603 = vmatpush1.msra.mxu0 %v589
        %604 = vmatprep.subr.mxu0 0.0
        %605 = vmatpush1.msra.mxu0 %v590
        %606 = vmatprep.subr.mxu0 0.0
        %607 = vmatpush1.msra.mxu0 0.0
        %608 = vmatprep.subr.mxu0 0.0
        %609 = vmatpush1.msra.mxu0 0.0
        %610 = vmatprep.subr.mxu0 0.0
        %611 = vmatpush1.msra.mxu0 0.0
        %612 = vmatprep.subr.mxu0 0.0
        %613 = vmatpush1.msra.mxu0 0.0
        %614 = vmatprep.subr.mxu0 0.0
        %615 = vmatpush1.msra.mxu0 0.0
        %616 = vmatprep.subr.mxu0 0.0
        %617 = vmatpush1.msra.mxu0 0.0
        %618 = vmatprep.subr.mxu0 0.0
        %619 = vmatpush1.msra.mxu0 0.0
        %620 = vmatprep.subr.mxu0 0.0
        %621 = vmatpush1.msra.mxu0 0.0
        %622 = vmatprep.subr.mxu0 0.0
        %623 = vmatpush1.msra.mxu0 0.0
        %624 = vmatprep.subr.mxu0 0.0
        %625 = vmatpush1.msra.mxu0 0.0
        %626 = vmatprep.subr.mxu0 0.0
        %627 = vmatpush1.msra.mxu0 0.0
        %628 = vmatprep.subr.mxu0 0.0
        %629 = vmatpush1.msra.mxu0 0.0
        %630 = vmatprep.subr.mxu0 0.0
        %631 = vmatpush1.msra.mxu0 0.0
        %632 = vmatprep.subr.mxu0 0.0
        %633 = vmatpush1.msra.mxu0 0.0
        %634 = vmatprep.subr.mxu0 0.0
        %635 = vmatpush1.msra.mxu0 0.0
        %636 = vmatprep.subr.mxu0 0.0
        %637 = vmatpush1.msra.mxu0 0.0
        %638 = vmatprep.subr.mxu0 0.0
        %639 = vmatpush1.msra.mxu0 0.0
        %640 = vmatprep.subr.mxu0 0.0
        %641 = vmatpush1.msra.mxu0 0.0
        %642 = vmatprep.subr.mxu0 0.0
        %643 = vmatpush1.msra.mxu0 0.0
        %644 = vmatprep.subr.mxu0 0.0
        %645 = vmatpush1.msra.mxu0 0.0
        %646 = vmatprep.subr.mxu0 0.0
        %647 = vmatpush1.msra.mxu0 0.0
        %648 = vmatprep.subr.mxu0 0.0
        %649 = vmatpush1.msra.mxu0 0.0
        %650 = vmatprep.subr.mxu0 0.0
        %651 = vmatpush1.msra.mxu0 0.0
        %652 = vmatprep.subr.mxu0 0.0
        %653 = vmatpush1.msra.mxu0 0.0
        %654 = vmatprep.subr.mxu0 0.0
        %655 = vmatpush1.msra.mxu0 0.0
        %656 = vmatprep.subr.mxu0 0.0
        %657 = vmatpush1.msra.mxu0 0.0
        %658 = vmatprep.subr.mxu0 0.0
        %659 = vmatpush1.msra.mxu0 0.0
        %660 = vmatprep.subr.mxu0 0.0
        %661 = vmatpush1.msra.mxu0 0.0
        %662 = vmatprep.subr.mxu0 0.0
        %663 = vmatpush1.msra.mxu0 0.0
        %664 = vmatprep.subr.mxu0 0.0
        %665 = vmatpush1.msra.mxu0 0.0
        %666 = vmatprep.mubr.f32.mxu0 0.0
        %667 = vmatmul.mubr.f32.gmra.mrb[0].mxu0 %v600
        %v668 = vpop.f32.mrb[0].mxu0
        %v669 = vadd.f32 %v596, %v668
        %v670 = vpop.f32.mrb[0].mxu0
        %671 = vdwg.mxu0
        %v672 = vadd.f32 %v669, %v367
        %673 = vst.msk [vmem:[%s339] sm:$0xff] %vm598, %v672
        %s674 = sand.u32 %s226, 1
        %s675 = scalar_lea.sflag [#allocation3], %s674
        %s676 = sand.u32 %s226, 1
        %s677 = smul.addr %s676, 8
        %s678 = scalar_lea.vmem [#allocation2], %s677
        // Predicated region
        $region53: #{inverted_residual_forward.1} parent=51 // pred_check
          %p679 = pneg %p236
        $region54: #{inverted_residual_forward.1} parent=51 // pred_check_branch
          %681 = sbr.rel (%p679) target = $region56
        $region55: #{inverted_residual_forward.1} parent=51 // pred_region
          %s683 = ssub.s32 128, 128
          %684 = vsyncadd %s675, %s683
          %s685 = sadd.s32 %s27, %s26
          %s686 = smul.addr %s685, 128
          %s687 = scalar_lea.hbm %s8, %s686
          %s689 = sshll.u32 %s678, 4
          %s690 = int_to_ptr.vmem [resolvable:$true] %s689
          %692 = dma.vmem_to_hbm [thread:$0]  %s690, 128, %s687, %s675
        $region56: #{inverted_residual_forward.1} parent=51 // pred_fallthru
          _
      $region52: #{inverted_residual_forward.1} parent=5 // pred_fallthru
        _
      %p693 = scmp.le.s32.totalorder 2, %s17
      // Predicated region
      $region57: #{inverted_residual_forward.1} parent=5 // pred_check
        %p694 = pneg %p693
      $region58: #{inverted_residual_forward.1} parent=5 // pred_check_branch
        %696 = sbr.rel (%p694) target = $region60
      $region59: #{inverted_residual_forward.1} parent=5 // pred_region
        %s697 = ssub.s32 %s17, 2
        // Predicated region
        $region61: #{inverted_residual_forward.1} parent=59 // pred_check
          %p698 = pneg %p242
        $region62: #{inverted_residual_forward.1} parent=59 // pred_check_branch
          %700 = sbr.rel (%p698) target = $region64
        $region63: #{inverted_residual_forward.1} parent=59 // pred_region
          %s701 = sand.u32 %s227, 1
          %s702 = scalar_lea.sflag [#allocation3], %s701
          %s703 = sand.u32 %s227, 1
          %s704 = smul.addr %s703, 8
          %s705 = scalar_lea.vmem [#allocation2], %s704
          %706 = dma.done %s702, 128
        $region64: #{inverted_residual_forward.1} parent=59 // pred_fallthru
          _
      $region60: #{inverted_residual_forward.1} parent=5 // pred_fallthru
        _
    $region6: #{inverted_residual_forward.1} parent=1 // loop_footer
      %s21 = sadd.s32 1, %s17
    $region7: #{inverted_residual_forward.1} parent=1 // loop_footer_branch
      %16 = sbr.rel target = $region3
    $region8: #{inverted_residual_forward.1} parent=1 // loop_exit
      _
    %707 = vsyncpa [#allocation3], 1
    %s708 = scalar_lea.sflag [#allocation3], 1
    %709 = vsyncpa %s708, 1

</llo_original>
